<compile_context>
chip_gen: v5e
topology: v5e:2x2
jax: 0.10.0
libtpu: 0.0.40
codegen_flags: <defaults>
</compile_context>

<pallas_src>
import math
import functools

import jax
import jax.numpy as jnp
from jax import lax
from jax.experimental import pallas as pl
from jax.experimental.pallas import tpu as pltpu


# ---------------------------------------------------------------------------
# In-kernel sinusoidal PE slab
# ---------------------------------------------------------------------------

def _pe_slab(ts, d_model, pos0):
    """PE for positions [pos0, pos0+ts) -> (ts, 1, d_model) float32.

    pe[p, d] = sin(p * freq[d] + (d & 1) * pi/2),
    freq[d]  = exp(-(2 * (d // 2)) * ln(10000) / d_model),
    which equals sin(p * w_j) for even d and cos(p * w_j) for odd d, matching
    the PyTorch buffer.
    """
    # Per-position column (ts, 1, 1): no flat index, no div/mod by constants.
    pos = (lax.broadcasted_iota(jnp.int32, (ts, 1, 1), 0) + pos0).astype(jnp.float32)
    # Per-feature row (1, 1, D): exp / parity evaluated only D times per block.
    d = lax.broadcasted_iota(jnp.int32, (1, 1, d_model), 2)
    freq = jnp.exp((d >> 1).astype(jnp.float32)
                   * (-2.0 * math.log(10000.0) / d_model))
    phase = (d & 1).astype(jnp.float32) * (math.pi / 2.0)
    # (ts, 1, D): one mul + add + sin per (position, feature).  The batch
    # dimension is handled by broadcasting in the caller (B-fold fewer sins).
    return jnp.sin(pos * freq + phase)


# ---------------------------------------------------------------------------
# Kernels
# ---------------------------------------------------------------------------

def _pe_add_kernel(x_ref, o_ref, *, d_model):
    ts = x_ref.shape[0]
    pe = _pe_slab(ts, d_model, pl.program_id(0) * ts)          # (ts, 1, D)
    o_ref[...] = (x_ref[...].astype(jnp.float32) + pe).astype(o_ref.dtype)


def _pe_add_dropout_kernel(x_ref, u_ref, o_ref, *, d_model, p, scale):
    ts = x_ref.shape[0]
    pe = _pe_slab(ts, d_model, pl.program_id(0) * ts)
    y = x_ref[...].astype(jnp.float32) + pe
    keep = u_ref[...] >= p                                     # P(keep) = 1 - p
    o_ref[...] = jnp.where(keep, y * scale, 0.0).astype(o_ref.dtype)


# ---------------------------------------------------------------------------
# Tiling
# ---------------------------------------------------------------------------

def _choose_tile_s(S, B, D, itemsize, target_block_bytes):
    bytes_per_pos = max(1, B * D * itemsize)
    ts = max(1, target_block_bytes // bytes_per_pos)
    # Guarantee >=4 grid steps (>=2 when S is tiny) so the "parallel" grid
    # axis actually engages both v7x TensorCores; extra steps are ~0.35us
    # each, negligible on single-TC v5e/v6e.  TS is the *leading* dim of a
    # 3-D block, so no (8,128) / dtype-packing alignment applies to it.
    if S >= 4:
        ts = min(ts, -(-S // 4))
    elif S >= 2:
        ts = min(ts, -(-S // 2))
    return min(ts, S)


# ---------------------------------------------------------------------------
# Forward wrapper
# ---------------------------------------------------------------------------

def positional_encoding_forward(x, *, dropout_p=0.1, training=False, seed=0,
                                max_len=5000,
                                target_block_bytes=4 * 1024 * 1024):
    """x: (S, B, D) seq-first layout, as the PyTorch module expects."""
    S, B, D = x.shape
    if D % 2 != 0:
        # Odd d_model breaks the cos assignment in the PyTorch module too.
        raise ValueError("d_model must be even")
    if S > max_len:
        raise ValueError(f"sequence length {S} exceeds max_len={max_len}")
    if not (0.0 <= float(dropout_p) <= 1.0):
        raise ValueError("dropout_p must be in [0, 1]")

    itemsize = jnp.dtype(x.dtype).itemsize
    ts = _choose_tile_s(S, B, D, itemsize, target_block_bytes)
    grid = (pl.cdiv(S, ts),)
    block = (ts, B, D)                 # full (B, D) minor dims -> always valid
    idx = lambda i: (i, 0, 0)
    cparams = pltpu.CompilerParams(
        dimension_semantics=("parallel",),
        vmem_limit_bytes=48 * 1024 * 1024,
    )
    out_shape = jax.ShapeDtypeStruct((S, B, D), x.dtype)

    if (not training) or dropout_p == 0.0:
        kern = functools.partial(_pe_add_kernel, d_model=D)
        return pl.pallas_call(
            kern,
            out_shape=out_shape,
            grid=grid,
            in_specs=[pl.BlockSpec(block, idx)],
            out_specs=pl.BlockSpec(block, idx),
            compiler_params=cparams,
        )(x)

    p = float(dropout_p)
    if p >= 1.0:
        # torch.nn.Dropout(p=1.0) zeroes everything (avoid 1/(1-p) div by 0).
        return jnp.zeros_like(x)

    # Training mode: inverted dropout with uniforms streamed from HBM.
    u = jax.random.uniform(jax.random.PRNGKey(seed), (S, B, D),
                           dtype=jnp.float32)
    kern = functools.partial(_pe_add_dropout_kernel, d_model=D,
                             p=p, scale=1.0 / (1.0 - p))
    return pl.pallas_call(
        kern,
        out_shape=out_shape,
        grid=grid,
        in_specs=[pl.BlockSpec(block, idx), pl.BlockSpec(block, idx)],
        out_specs=pl.BlockSpec(block, idx),
        compiler_params=cparams,
    )(x, u)


# ---------------------------------------------------------------------------
# Pure-JAX reference table (mirrors PositionalEncoding.__init__)
# ---------------------------------------------------------------------------

def make_pe_table(d_model, max_len=5000, dtype=jnp.float32):
    assert d_model % 2 == 0, "d_model must be even"
    position = jnp.arange(max_len, dtype=jnp.float32)[:, None]
    div_term = jnp.exp(jnp.arange(0, d_model, 2, dtype=jnp.float32)
                       * (-math.log(10000.0) / d_model))
    ang = position * div_term
    pe = jnp.zeros((max_len, d_model), dtype=jnp.float32)
    pe = pe.at[:, 0::2].set(jnp.sin(ang))
    pe = pe.at[:, 1::2].set(jnp.cos(ang))
    return pe.astype(dtype)


# ---------------------------------------------------------------------------
# Main
# ---------------------------------------------------------------------------

if __name__ == "__main__":
    S, B, D = 8, 2, 32          # seq_len, batch, d_model
    key = jax.random.PRNGKey(0)
    x = jax.random.normal(key, (S, B, D), dtype=jnp.float32)

    pe = make_pe_table(D, max_len=64)
    ref = x + pe[:S][:, None, :]

    # Eval mode: dropout is identity -> broadcasted add with in-kernel PE.
    out = positional_encoding_forward(x, dropout_p=0.1, training=False)
    out = jax.block_until_ready(out)
    assert out.shape == (S, B, D)
    assert jnp.allclose(out, ref, atol=1e-4, rtol=1e-4), \
        float(jnp.max(jnp.abs(out - ref)))

    # Training mode: inverted dropout (statistical semantics, not torch RNG).
    p = 0.25
    out_tr = positional_encoding_forward(x, dropout_p=p, training=True,
                                         seed=1234)
    out_tr = jax.block_until_ready(out_tr)
    assert out_tr.shape == (S, B, D)
    scale = 1.0 / (1.0 - p)
    is_zero = jnp.isclose(out_tr, 0.0, atol=1e-6)
    is_kept = jnp.isclose(out_tr, ref * scale, atol=1e-4, rtol=1e-4)
    assert bool(jnp.all(is_zero | is_kept))
    drop_frac = float(jnp.mean(is_zero.astype(jnp.float32)))
    assert 0.0 < drop_frac < 0.7    # loose statistical sanity check

    print("KERNEL_OK")
</pallas_src>

<mosaic_0001>
module attributes {stable_mosaic.version = 11 : i64} {
  func.func @_pe_add_kernel(%arg0: i32, %arg1: memref<2x2x32xf32, #tpu.memory_space<vmem>>, %arg2: memref<2x2x32xf32, #tpu.memory_space<vmem>>) attributes {dimension_semantics = [#tpu.dimension_semantics<parallel>], iteration_bounds = array<i64: 4>, scalar_prefetch = 0 : i64, scratch_operands = 0 : i64, tpu.core_type = #tpu.core_type<tc>, window_params = [{transform_indices = @transform_0, window_bounds = array<i64: 2, 2, 32>}, {transform_indices = @transform_1, window_bounds = array<i64: 2, 2, 32>}]} {
    %c2_i32 = arith.constant 2 : i32
    %0 = arith.muli %arg0, %c2_i32 : i32
    %1 = tpu.iota {dimensions = array<i32: 0>} : vector<2x1x1xi32>
    %2 = vector.broadcast %0 : i32 to vector<2x1x1xi32>
    %3 = arith.addi %1, %2 : vector<2x1x1xi32>
    %4 = arith.sitofp %3 : vector<2x1x1xi32> to vector<2x1x1xf32>
    %5 = tpu.iota {dimensions = array<i32: 2>} : vector<1x1x32xi32>
    %c1_i32 = arith.constant 1 : i32
    %6 = vector.broadcast %c1_i32 : i32 to vector<1x1x32xi32>
    %7 = arith.shrsi %5, %6 : vector<1x1x32xi32>
    %8 = arith.sitofp %7 : vector<1x1x32xi32> to vector<1x1x32xf32>
    %cst = arith.constant -0.575646281 : f32
    %9 = vector.broadcast %cst : f32 to vector<1x1x32xf32>
    %10 = arith.mulf %8, %9 : vector<1x1x32xf32>
    %11 = math.exp %10 : vector<1x1x32xf32>
    %c1_i32_0 = arith.constant 1 : i32
    %12 = vector.broadcast %c1_i32_0 : i32 to vector<1x1x32xi32>
    %13 = arith.andi %5, %12 : vector<1x1x32xi32>
    %14 = arith.sitofp %13 : vector<1x1x32xi32> to vector<1x1x32xf32>
    %cst_1 = arith.constant 1.57079637 : f32
    %15 = vector.broadcast %cst_1 : f32 to vector<1x1x32xf32>
    %16 = arith.mulf %14, %15 : vector<1x1x32xf32>
    %17 = vector.broadcast %4 : vector<2x1x1xf32> to vector<2x1x32xf32>
    %18 = vector.broadcast %11 : vector<1x1x32xf32> to vector<2x1x32xf32>
    %19 = arith.mulf %17, %18 : vector<2x1x32xf32>
    %20 = vector.broadcast %16 : vector<1x1x32xf32> to vector<2x1x32xf32>
    %21 = arith.addf %19, %20 : vector<2x1x32xf32>
    %22 = math.sin %21 : vector<2x1x32xf32>
    %c0 = arith.constant 0 : index
    %c0_2 = arith.constant 0 : index
    %c0_3 = arith.constant 0 : index
    %23 = vector.load %arg1[%c0, %c0_2, %c0_3] : memref<2x2x32xf32, #tpu.memory_space<vmem>>, vector<2x2x32xf32>
    %24 = vector.broadcast %22 : vector<2x1x32xf32> to vector<2x2x32xf32>
    %25 = arith.addf %23, %24 : vector<2x2x32xf32>
    %c0_4 = arith.constant 0 : index
    %c0_5 = arith.constant 0 : index
    %c0_6 = arith.constant 0 : index
    %26 = vector.load %arg2[%c0_4, %c0_5, %c0_6] : memref<2x2x32xf32, #tpu.memory_space<vmem>>, vector<2x2x32xf32>
    tpu.vector_store %arg2[%c0_4, %c0_5, %c0_6], %25 {strides = array<i32>} : memref<2x2x32xf32, #tpu.memory_space<vmem>>, vector<2x2x32xf32>,
    return
  }
  func.func @transform_0(%arg0: i32) -> (i32, i32, i32) {
    %c0_i32 = arith.constant 0 : i32
    %c0_i32_0 = arith.constant 0 : i32
    %c0_i32_1 = arith.constant 0 : i32
    return %arg0, %c0_i32, %c0_i32_0 : i32, i32, i32
  }
  func.func @transform_1(%arg0: i32) -> (i32, i32, i32) {
    %c0_i32 = arith.constant 0 : i32
    %c0_i32_0 = arith.constant 0 : i32
    %c0_i32_1 = arith.constant 0 : i32
    return %arg0, %c0_i32, %c0_i32_0 : i32, i32, i32
  }
}

</mosaic_0001>

<llo_original>
// kernel: tpu_custom_call.1
$region0: #{tpu_custom_call.1}
  #allocation0 [shape = 'u32[]', space=smem, size = 0x4, offset = 0x4, fixed_abs, tag = 'smem constant byte address 0x4 - core index']
  #allocation1 [shape = 'u32[72,128]{1,0:T(1,128)}', space=vmem, size = 0x9000, scoped, tag = 'internal scratch']
  %s0 = inlined_call_operand.hbm [shape: f32[8,2,32], index: 0, kind: input, shape index: {}]
  %s1 = inlined_call_operand.hbm [shape: f32[8,2,32], index: 1, kind: output, shape index: {}]
  %s2 = sld [smem:[#allocation0]]
  $region41: #{tpu_custom_call.1} parent=0
    _
  %s4 = ssub.s32 1, %s2
  %s5 = scalar_select 0, %s4, %s2
  $region1: #{tpu_custom_call.1} parent=0
    #allocation2 [shape = 'u8[4096]{0}', space=vmem, size = 0x1000, scoped, tag = 'input window, operand 0']
    #allocation3 [shape = 's32[2]{0}', space=sflag, size = 0x8, scoped, tag = 'scoped memory for tpu_custom_call.1']
    #allocation4 [shape = 's32[2]{0}', space=sflag, size = 0x8, scoped, tag = 'scoped memory for tpu_custom_call.1']
    #allocation5 [shape = 'u8[4096]{0}', space=vmem, size = 0x1000, scoped, tag = 'output window, operand 0']
    %6 = vsyncpa [#allocation3], 0
    %s7 = scalar_lea.sflag [#allocation3], 1
    %8 = vsyncpa %s7, 0
    %9 = vsyncpa [#allocation4], 0
    %s10 = scalar_lea.sflag [#allocation4], 1
    %11 = vsyncpa %s10, 0
    loop: start=0, step=1, limit=6
    $region2: #{tpu_custom_call.1} parent=1 // loop_pre_header
      _
    $region3: #{tpu_custom_call.1} parent=1 // loop_header
      %s13 = sphi 0, %s17
      %p14 = scmp.ge.s32.totalorder %s13, 6
      %s23 = sphi 0, %s25
      %s26 = sphi 0, %s23
      %s27 = sphi 0, %s26
      %s43 = sphi 0, %s27
      %s49 = sphi 0, %s51
      %s52 = sphi 0, %s49
      %s53 = sphi 0, %s52
      %s69 = sphi 0, %s53
    $region4: #{tpu_custom_call.1} parent=1 // loop_header_branch
      %16 = sbr.rel (%p14) target = $region8
    $region5: #{tpu_custom_call.1} parent=1 // loop_body
      %s18 = ssub.s32 %s13, 1
      %s19 = ssub.s32 %s13, 2
      %s20 = sadd.s32 %s13, 1
      %s21 = ssub.s32 %s13, %s20
      %p22 = scmp.eq.s32.totalorder %s21, 0
      %s24 = sadd.s32 %s23, 1
      %s25 = scalar_select %p22, %s23, %s24
      %p28 = pneg %p22
      %p29 = scmp.eq.s32.totalorder %s13, 3
      %p30 = por %p28, %p29
      %p31 = scmp.ne.s32.totalorder %s23, %s26
      %p32 = scmp.eq.s32.totalorder %s13, 0
      %p33 = por %p31, %p32
      %p34 = scmp.ne.s32.totalorder %s23, %s26
      %p35 = scmp.eq.s32.totalorder %s18, 3
      %p36 = por %p34, %p35
      %p37 = scmp.ne.s32.totalorder %s26, %s27
      %p38 = scmp.eq.s32.totalorder %s18, 0
      %p39 = por %p37, %p38
      %p40 = scmp.ne.s32.totalorder %s26, %s27
      %p41 = scmp.eq.s32.totalorder %s19, 3
      %p42 = por %p40, %p41
      %p44 = scmp.ne.s32.totalorder %s27, %s43
      %p45 = scmp.eq.s32.totalorder %s19, 0
      %p46 = por %p44, %p45
      %s47 = ssub.s32 %s13, %s20
      %p48 = scmp.eq.s32.totalorder %s47, 0
      %s50 = sadd.s32 %s49, 1
      %s51 = scalar_select %p48, %s49, %s50
      %p54 = pneg %p48
      %p55 = scmp.eq.s32.totalorder %s13, 3
      %p56 = por %p54, %p55
      %p57 = scmp.ne.s32.totalorder %s49, %s52
      %p58 = scmp.eq.s32.totalorder %s13, 0
      %p59 = por %p57, %p58
      %p60 = scmp.ne.s32.totalorder %s49, %s52
      %p61 = scmp.eq.s32.totalorder %s18, 3
      %p62 = por %p60, %p61
      %p63 = scmp.ne.s32.totalorder %s52, %s53
      %p64 = scmp.eq.s32.totalorder %s18, 0
      %p65 = por %p63, %p64
      %p66 = scmp.ne.s32.totalorder %s52, %s53
      %p67 = scmp.eq.s32.totalorder %s19, 3
      %p68 = por %p66, %p67
      %p70 = scmp.ne.s32.totalorder %s53, %s69
      %p71 = scmp.eq.s32.totalorder %s19, 0
      %p72 = por %p70, %p71
      %p73 = scmp.le.s32.totalorder 1, %s13
      %p74 = scmp.lt.s32.totalorder %s13, 5
      %p75 = pnand %p73, %p74
      %p76 = pneg %p75
      // Predicated region
      $region9: #{tpu_custom_call.1} parent=5 // pred_check
        _
      $region10: #{tpu_custom_call.1} parent=5 // pred_check_branch
        %78 = sbr.rel (%p75) target = $region12
      $region11: #{tpu_custom_call.1} parent=5 // pred_region
        %s79 = ssub.s32 %s13, 1
      $region12: #{tpu_custom_call.1} parent=5 // pred_fallthru
        _
      %p80 = scmp.lt.s32.totalorder %s13, 4
      // Predicated region
      $region13: #{tpu_custom_call.1} parent=5 // pred_check
        %p81 = pneg %p80
      $region14: #{tpu_custom_call.1} parent=5 // pred_check_branch
        %83 = sbr.rel (%p81) target = $region16
      $region15: #{tpu_custom_call.1} parent=5 // pred_region
        // Predicated region
        $region17: #{tpu_custom_call.1} parent=15 // pred_check
          %p84 = pneg %p33
        $region18: #{tpu_custom_call.1} parent=15 // pred_check_branch
          %86 = sbr.rel (%p84) target = $region20
        $region19: #{tpu_custom_call.1} parent=15 // pred_region
          %s87 = sand.u32 %s23, 1
          %s88 = scalar_lea.sflag [#allocation3], %s87
          %s89 = sand.u32 %s23, 1
          %s90 = smul.addr %s89, 4
          %s91 = scalar_lea.vmem [#allocation2], %s90
          %s92 = smul.u32 2, %s13
          %94 = vsyncadd %s88, 0
          %s95 = smul.addr %s92, 2
          %s96 = scalar_lea.hbm %s0, %s95
          %s97 = sshll.u32 %s96, 4
          %s98 = int_to_ptr.hbm [resolvable:$true] %s97
          %s99 = sshll.u32 %s91, 4
          %s100 = int_to_ptr.vmem [resolvable:$true] %s99
          %105 = dma.hbm_to_vmem [thread:$0]  %s98, 64, %s100, %s88, 32, 32, 2
        $region20: #{tpu_custom_call.1} parent=15 // pred_fallthru
          _
      $region16: #{tpu_custom_call.1} parent=5 // pred_fallthru
        _
      %p106 = scmp.le.s32.totalorder 1, %s13
      %p107 = scmp.lt.s32.totalorder %s13, 5
      %p108 = pnand %p106, %p107
      %p109 = pneg %p108
      // Predicated region
      $region21: #{tpu_custom_call.1} parent=5 // pred_check
        _
      $region22: #{tpu_custom_call.1} parent=5 // pred_check_branch
        %111 = sbr.rel (%p108) target = $region24
      $region23: #{tpu_custom_call.1} parent=5 // pred_region
        %s112 = ssub.s32 %s13, 1
        %s113 = sand.u32 %s26, 1
        %s114 = scalar_lea.sflag [#allocation3], %s113
        %s115 = sand.u32 %s26, 1
        %s116 = smul.addr %s115, 4
        %s117 = scalar_lea.vmem [#allocation2], %s116
        // Predicated region
        $region25: #{tpu_custom_call.1} parent=23 // pred_check
          %p118 = pneg %p39
        $region26: #{tpu_custom_call.1} parent=23 // pred_check_branch
          %120 = sbr.rel (%p118) target = $region28
        $region27: #{tpu_custom_call.1} parent=23 // pred_region
          %122 = dma.done %s114, 64
        $region28: #{tpu_custom_call.1} parent=23 // pred_fallthru
          _
        %s123 = sand.u32 %s26, 1
        %s124 = scalar_lea.sflag [#allocation3], %s123
        %s125 = sand.u32 %s26, 1
        %s126 = smul.addr %s125, 4
        %s127 = scalar_lea.vmem [#allocation2], %s126
        %p128 = pneg %p39
        %p129 = pneg %p36
        %p130 = pneg %p65
        %p131 = pneg %p62
        %s132 = sand.u32 %s52, 1
        %s133 = scalar_lea.sflag [#allocation4], %s132
        %s134 = sand.u32 %s52, 1
        %s135 = smul.addr %s134, 4
        %s136 = scalar_lea.vmem [#allocation5], %s135
        %s137 = smul.u32 2, %s18
        %s138 = smul.u32 2, %s18
        %s139 = smul.u32 %s18, 2
        %v140 = vstv %s139
        %v141 = vadd.s32 %v140, 1
        %v142 = vcvt.s32.f32 %v140
        %v143 = vcvt.s32.f32 %v141
        %v144 = vlaneseq
        %v145 = vand.u32 %v144, 127
        %v146 = vshra.s32 %v145, 1
        %v147 = vcvt.s32.f32 %v146
        %v148 = vmul.f32 %v147, -0.5756463
        %v149 = vmul.f32 %v148, 1.442695
        %v150 = vpow.pop %v149
        %v151 = vand.u32 %v145, 1
        %v152 = vcvt.s32.f32 %v151
        %v153 = vmul.f32 %v152, 1.5707964
        %v154 = vmul.f32 %v142, %v150
        %v155 = vmul.f32 %v143, %v150
        %v156 = vadd.f32 %v154, %v153
        %v157 = vadd.f32 %v155, %v153
        %v158 = vand.u32 2147483647, %v156
        %vm159 = vcmp.le.f32.partialorder %v158, 0.7853982
        %vm160 = vcmp.lt.s32.totalorder %v156, 0
        %v161 = vand.u32 %v156, 2139095040
        %v162 = vshrl.u32 %v161, 23
        %v163 = vsub.s32 %v162, 127
        %v164 = vand.u32 2147483647, %v156
        %v165 = vand.u32 %v164, 8388607
        %v166 = vor.u32 %v165, 8388608
        %v167 = vsub.s32 0, %v166
        %v168 = vadd.s32 %v163, 1
        %vm169 = vcmp.gt.s32.totalorder %v168, 0
        %v170 = vsel %vm169, %v168, 0
        %v171 = vshrl.u32 %v170, 5
        %v172 = vand.u32 %v170, 31
        %v173 = vsub.s32 32, %v172
        %v174 = vshrl.u32 683565275, %v173
        %v175 = vshll.u32 683565275, %v172
        %v176 = vshrl.u32 2475754826, %v173
        %v177 = vor.u32 %v175, %v176
        %v178 = vshll.u32 2475754826, %v172
        %v179 = vshrl.u32 2131351028, %v173
        %v180 = vor.u32 %v178, %v179
        %v181 = vshll.u32 2131351028, %v172
        %v182 = vshrl.u32 2102212464, %v173
        %v183 = vor.u32 %v181, %v182
        %v184 = vshll.u32 2102212464, %v172
        %v185 = vshrl.u32 920167782, %v173
        %v186 = vor.u32 %v184, %v185
        %v187 = vshll.u32 920167782, %v172
        %v188 = vshrl.u32 1326507024, %v173
        %v189 = vor.u32 %v187, %v188
        %vm190 = vcmp.lt.s32.totalorder %v171, 1
        %vm191 = vcmp.lt.s32.totalorder %v171, 2
        %vm192 = vcmp.lt.s32.totalorder %v171, 3
        %vm193 = vcmp.lt.s32.totalorder %v171, 4
        %v194 = vsel %vm190, %v174, %v177
        %v195 = vsel %vm193, %v183, 2102212464
        %v196 = vsel %vm192, %v180, %v195
        %v197 = vsel %vm191, %v194, %v196
        %v198 = vsel %vm190, %v177, %v180
        %v199 = vsel %vm193, %v186, 920167782
        %v200 = vsel %vm192, %v183, %v199
        %v201 = vsel %vm191, %v198, %v200
        %v202 = vsel %vm190, %v180, %v183
        %v203 = vsel %vm193, %v189, 1326507024
        %v204 = vsel %vm192, %v186, %v203
        %v205 = vsel %vm191, %v202, %v204
        %v206 = vshll.u32 %v166, 8
        %v207 = vand.u32 %v206, 65535
        %v208 = vshrl.u32 %v206, 16
        %v209 = vand.u32 %v205, 65535
        %v210 = vshrl.u32 %v205, 16
        %v211 = vmul.u32 %v207, %v209
        %v212 = vmul.u32 %v207, %v210
        %v213 = vmul.u32 %v208, %v209
        %v214 = vmul.u32 %v208, %v210
        %v215 = vshll.u32 %v212, 16
        %v216 = vshrl.u32 %v212, 16
        %v217 = vshll.u32 %v213, 16
        %v218 = vshrl.u32 %v213, 16
        %vm219 = vc.u32 %v211, %v215
        %v220 = vsel %vm219, 1, 0
        %v221 = vadd.s32 %v211, %v215
        %v222 = vadd.s32 %v214, %v220
        %vm223 = vc.u32 %v221, %v217
        %v224 = vsel %vm223, 1, 0
        %v225 = vadd.s32 %v221, %v217
        %v226 = vadd.s32 %v222, %v224
        %v227 = vadd.s32 %v226, %v216
        %v228 = vadd.s32 %v227, %v218
        %v229 = vand.u32 %v206, 65535
        %v230 = vshrl.u32 %v206, 16
        %v231 = vand.u32 %v201, 65535
        %v232 = vshrl.u32 %v201, 16
        %v233 = vmul.u32 %v229, %v231
        %v234 = vmul.u32 %v229, %v232
        %v235 = vmul.u32 %v230, %v231
        %v236 = vmul.u32 %v230, %v232
        %v237 = vshll.u32 %v234, 16
        %v238 = vshrl.u32 %v234, 16
        %v239 = vshll.u32 %v235, 16
        %v240 = vshrl.u32 %v235, 16
        %vm241 = vc.u32 %v233, %v237
        %v242 = vsel %vm241, 1, 0
        %v243 = vadd.s32 %v233, %v237
        %v244 = vadd.s32 %v236, %v242
        %vm245 = vc.u32 %v243, %v239
        %v246 = vsel %vm245, 1, 0
        %v247 = vadd.s32 %v243, %v239
        %v248 = vadd.s32 %v244, %v246
        %v249 = vadd.s32 %v248, %v238
        %v250 = vadd.s32 %v249, %v240
        %v251 = vmul.u32 %v206, %v197
        %v252 = vadd.s32 %v228, %v247
        %vm253 = vc.u32 %v228, %v247
        %v254 = vadd.s32 %v250, 1
        %v255 = vsel %vm253, %v254, %v250
        %v256 = vadd.s32 %v251, %v255
        %v257 = vadd.s32 %v256, 536870912
        %v258 = vshrl.u32 %v257, 30
        %v259 = vshll.u32 %v258, 30
        %v260 = vsub.s32 %v256, %v259
        %vm261 = vcmp.lt.s32.totalorder %v260, 0
        %v262 = vsub.s32 0, %v260
        %v263 = vsel %vm261, %v262, %v260
        %v264 = vclz %v263
        %v265 = vsub.s32 %v264, 2
        %vm266 = vcmp.gt.s32.totalorder 0, %v265
        %v267 = vsel %vm266, 0, %v265
        %v268 = vsub.s32 32, %v267
        %v269 = vshll.u32 %v260, %v267
        %v270 = vshrl.u32 %v252, %v268
        %v271 = vor.u32 %v269, %v270
        %v272 = vsub.s32 4294967266, %v267
        %v273 = vadd.s32 %v272, 127
        %v274 = vshll.u32 %v273, 23
        %v275 = vor.u32 4788187, %v274
        %v276 = vand.u32 2147483647, %v275
        %v278 = vcvt.s32.f32 %v271
        %v279 = vmul.f32 %v278, %v276
        %v280 = vxor.u32 %v279, 2147483648
        %v281 = vsel %vm160, %v280, %v279
        %v282 = vsub.s32 4, %v258
        %v283 = vsel %vm160, %v282, %v258
        %v284 = vsel %vm159, %v156, %v281
        %v285 = vsel %vm159, 0, %v283
        %v286 = vmul.f32 %v284, %v284
        %v287 = vmul.f32 %v286, -0.001358992
        %v288 = vadd.f32 %v287, 0.041655596
        %v289 = vmul.f32 %v286, %v288
        %v290 = vadd.f32 %v289, -0.4999988
        %v291 = vmul.f32 %v286, %v290
        %v292 = vadd.f32 1.0, %v291
        %v293 = vmul.f32 %v284, %v284
        %v294 = vmul.f32 %v293, -0.00019511016
        %v295 = vadd.f32 %v294, 0.008332121
        %v296 = vmul.f32 %v293, %v295
        %v297 = vadd.f32 %v296, -0.16666654
        %v298 = vmul.f32 %v293, %v297
        %v299 = vadd.f32 %v298, 1.0
        %v300 = vmul.f32 %v299, %v284
        %vm301 = vweird.f32 %v156
        %v302 = vadd.s32 %v285, 3
        %v303 = vand.u32 %v302, 3
        %vm304 = vcmp.lt.s32.totalorder %v303, 2
        %vm305 = vcmp.eq.s32.totalorder %v303, 0
        %v306 = vxor.u32 %v300, 2147483648
        %v307 = vsel %vm305, %v292, %v306
        %vm308 = vcmp.eq.s32.totalorder %v303, 2
        %v309 = vxor.u32 %v292, 2147483648
        %v310 = vsel %vm308, %v309, %v300
        %v311 = vsel %vm304, %v307, %v310
        %v312 = vsel %vm301, nan, %v311
        %v313 = vand.u32 2147483647, %v157
        %vm314 = vcmp.le.f32.partialorder %v313, 0.7853982
        %vm315 = vcmp.lt.s32.totalorder %v157, 0
        %v316 = vand.u32 %v157, 2139095040
        %v317 = vshrl.u32 %v316, 23
        %v318 = vsub.s32 %v317, 127
        %v319 = vand.u32 2147483647, %v157
        %v320 = vand.u32 %v319, 8388607
        %v321 = vor.u32 %v320, 8388608
        %v322 = vsub.s32 0, %v321
        %v323 = vadd.s32 %v318, 1
        %vm324 = vcmp.gt.s32.totalorder %v323, 0
        %v325 = vsel %vm324, %v323, 0
        %v326 = vshrl.u32 %v325, 5
        %v327 = vand.u32 %v325, 31
        %v328 = vsub.s32 32, %v327
        %v329 = vshrl.u32 683565275, %v328
        %v330 = vshll.u32 683565275, %v327
        %v331 = vshrl.u32 2475754826, %v328
        %v332 = vor.u32 %v330, %v331
        %v333 = vshll.u32 2475754826, %v327
        %v334 = vshrl.u32 2131351028, %v328
        %v335 = vor.u32 %v333, %v334
        %v336 = vshll.u32 2131351028, %v327
        %v337 = vshrl.u32 2102212464, %v328
        %v338 = vor.u32 %v336, %v337
        %v339 = vshll.u32 2102212464, %v327
        %v340 = vshrl.u32 920167782, %v328
        %v341 = vor.u32 %v339, %v340
        %v342 = vshll.u32 920167782, %v327
        %v343 = vshrl.u32 1326507024, %v328
        %v344 = vor.u32 %v342, %v343
        %vm345 = vcmp.lt.s32.totalorder %v326, 1
        %vm346 = vcmp.lt.s32.totalorder %v326, 2
        %vm347 = vcmp.lt.s32.totalorder %v326, 3
        %vm348 = vcmp.lt.s32.totalorder %v326, 4
        %v349 = vsel %vm345, %v329, %v332
        %v350 = vsel %vm348, %v338, 2102212464
        %v351 = vsel %vm347, %v335, %v350
        %v352 = vsel %vm346, %v349, %v351
        %v353 = vsel %vm345, %v332, %v335
        %v354 = vsel %vm348, %v341, 920167782
        %v355 = vsel %vm347, %v338, %v354
        %v356 = vsel %vm346, %v353, %v355
        %v357 = vsel %vm345, %v335, %v338
        %v358 = vsel %vm348, %v344, 1326507024
        %v359 = vsel %vm347, %v341, %v358
        %v360 = vsel %vm346, %v357, %v359
        %v361 = vshll.u32 %v321, 8
        %v362 = vand.u32 %v361, 65535
        %v363 = vshrl.u32 %v361, 16
        %v364 = vand.u32 %v360, 65535
        %v365 = vshrl.u32 %v360, 16
        %v366 = vmul.u32 %v362, %v364
        %v367 = vmul.u32 %v362, %v365
        %v368 = vmul.u32 %v363, %v364
        %v369 = vmul.u32 %v363, %v365
        %v370 = vshll.u32 %v367, 16
        %v371 = vshrl.u32 %v367, 16
        %v372 = vshll.u32 %v368, 16
        %v373 = vshrl.u32 %v368, 16
        %vm374 = vc.u32 %v366, %v370
        %v375 = vsel %vm374, 1, 0
        %v376 = vadd.s32 %v366, %v370
        %v377 = vadd.s32 %v369, %v375
        %vm378 = vc.u32 %v376, %v372
        %v379 = vsel %vm378, 1, 0
        %v380 = vadd.s32 %v376, %v372
        %v381 = vadd.s32 %v377, %v379
        %v382 = vadd.s32 %v381, %v371
        %v383 = vadd.s32 %v382, %v373
        %v384 = vand.u32 %v361, 65535
        %v385 = vshrl.u32 %v361, 16
        %v386 = vand.u32 %v356, 65535
        %v387 = vshrl.u32 %v356, 16
        %v388 = vmul.u32 %v384, %v386
        %v389 = vmul.u32 %v384, %v387
        %v390 = vmul.u32 %v385, %v386
        %v391 = vmul.u32 %v385, %v387
        %v392 = vshll.u32 %v389, 16
        %v393 = vshrl.u32 %v389, 16
        %v394 = vshll.u32 %v390, 16
        %v395 = vshrl.u32 %v390, 16
        %vm396 = vc.u32 %v388, %v392
        %v397 = vsel %vm396, 1, 0
        %v398 = vadd.s32 %v388, %v392
        %v399 = vadd.s32 %v391, %v397
        %vm400 = vc.u32 %v398, %v394
        %v401 = vsel %vm400, 1, 0
        %v402 = vadd.s32 %v398, %v394
        %v403 = vadd.s32 %v399, %v401
        %v404 = vadd.s32 %v403, %v393
        %v405 = vadd.s32 %v404, %v395
        %v406 = vmul.u32 %v361, %v352
        %v407 = vadd.s32 %v383, %v402
        %vm408 = vc.u32 %v383, %v402
        %v409 = vadd.s32 %v405, 1
        %v410 = vsel %vm408, %v409, %v405
        %v411 = vadd.s32 %v406, %v410
        %v412 = vadd.s32 %v411, 536870912
        %v413 = vshrl.u32 %v412, 30
        %v414 = vshll.u32 %v413, 30
        %v415 = vsub.s32 %v411, %v414
        %vm416 = vcmp.lt.s32.totalorder %v415, 0
        %v417 = vsub.s32 0, %v415
        %v418 = vsel %vm416, %v417, %v415
        %v419 = vclz %v418
        %v420 = vsub.s32 %v419, 2
        %vm421 = vcmp.gt.s32.totalorder 0, %v420
        %v422 = vsel %vm421, 0, %v420
        %v423 = vsub.s32 32, %v422
        %v424 = vshll.u32 %v415, %v422
        %v425 = vshrl.u32 %v407, %v423
        %v426 = vor.u32 %v424, %v425
        %v427 = vsub.s32 4294967266, %v422
        %v428 = vadd.s32 %v427, 127
        %v429 = vshll.u32 %v428, 23
        %v430 = vor.u32 4788187, %v429
        %v431 = vand.u32 2147483647, %v430
        %v433 = vcvt.s32.f32 %v426
        %v434 = vmul.f32 %v433, %v431
        %v435 = vxor.u32 %v434, 2147483648
        %v436 = vsel %vm315, %v435, %v434
        %v437 = vsub.s32 4, %v413
        %v438 = vsel %vm315, %v437, %v413
        %v439 = vsel %vm314, %v157, %v436
        %v440 = vsel %vm314, 0, %v438
        %v441 = vmul.f32 %v439, %v439
        %v442 = vmul.f32 %v441, -0.001358992
        %v443 = vadd.f32 %v442, 0.041655596
        %v444 = vmul.f32 %v441, %v443
        %v445 = vadd.f32 %v444, -0.4999988
        %v446 = vmul.f32 %v441, %v445
        %v447 = vadd.f32 1.0, %v446
        %v448 = vmul.f32 %v439, %v439
        %v449 = vmul.f32 %v448, -0.00019511016
        %v450 = vadd.f32 %v449, 0.008332121
        %v451 = vmul.f32 %v448, %v450
        %v452 = vadd.f32 %v451, -0.16666654
        %v453 = vmul.f32 %v448, %v452
        %v454 = vadd.f32 %v453, 1.0
        %v455 = vmul.f32 %v454, %v439
        %vm456 = vweird.f32 %v157
        %v457 = vadd.s32 %v440, 3
        %v458 = vand.u32 %v457, 3
        %vm459 = vcmp.lt.s32.totalorder %v458, 2
        %vm460 = vcmp.eq.s32.totalorder %v458, 0
        %v461 = vxor.u32 %v455, 2147483648
        %v462 = vsel %vm460, %v447, %v461
        %vm463 = vcmp.eq.s32.totalorder %v458, 2
        %v464 = vxor.u32 %v447, 2147483648
        %v465 = vsel %vm463, %v464, %v455
        %v466 = vsel %vm459, %v462, %v465
        %v467 = vsel %vm456, nan, %v466
        %v468 = vld [vmem:[%s117] sm:$0x3]
        %v469 = vld [vmem:[%s117 + $0x2] sm:$0x3]
        %v470 = vadd.f32 %v468, %v312
        %v471 = vadd.f32 %v469, %v467
        %vm472 = vcmask 254976
        %473 = vst.msk [vmem:[%s136] sm:$0x3] %vm472, %v470
        %474 = vst.msk [vmem:[%s136 + $0x2] sm:$0x3] %vm472, %v471
        %s475 = sand.u32 %s52, 1
        %s476 = scalar_lea.sflag [#allocation4], %s475
        %s477 = sand.u32 %s52, 1
        %s478 = smul.addr %s477, 4
        %s479 = scalar_lea.vmem [#allocation5], %s478
        // Predicated region
        $region29: #{tpu_custom_call.1} parent=23 // pred_check
          %p480 = pneg %p62
        $region30: #{tpu_custom_call.1} parent=23 // pred_check_branch
          %482 = sbr.rel (%p480) target = $region32
        $region31: #{tpu_custom_call.1} parent=23 // pred_region
          %s483 = smul.u32 2, %s18
          %485 = vsyncadd %s476, 0
          %s486 = smul.addr %s483, 2
          %s487 = scalar_lea.hbm %s1, %s486
          %s488 = sshll.u32 %s479, 4
          %s489 = int_to_ptr.vmem [resolvable:$true] %s488
          %s490 = sshll.u32 %s487, 4
          %s491 = int_to_ptr.hbm [resolvable:$true] %s490
          %496 = dma.vmem_to_hbm [thread:$0]  %s489, 64, %s491, %s476, 32, 32, 2
        $region32: #{tpu_custom_call.1} parent=23 // pred_fallthru
          _
      $region24: #{tpu_custom_call.1} parent=5 // pred_fallthru
        _
      %p497 = scmp.le.s32.totalorder 2, %s13
      // Predicated region
      $region33: #{tpu_custom_call.1} parent=5 // pred_check
        %p498 = pneg %p497
      $region34: #{tpu_custom_call.1} parent=5 // pred_check_branch
        %500 = sbr.rel (%p498) target = $region36
      $region35: #{tpu_custom_call.1} parent=5 // pred_region
        %s501 = ssub.s32 %s13, 2
        // Predicated region
        $region37: #{tpu_custom_call.1} parent=35 // pred_check
          %p502 = pneg %p68
        $region38: #{tpu_custom_call.1} parent=35 // pred_check_branch
          %504 = sbr.rel (%p502) target = $region40
        $region39: #{tpu_custom_call.1} parent=35 // pred_region
          %s505 = sand.u32 %s53, 1
          %s506 = scalar_lea.sflag [#allocation4], %s505
          %s507 = sand.u32 %s53, 1
          %s508 = smul.addr %s507, 4
          %s509 = scalar_lea.vmem [#allocation5], %s508
          %511 = dma.done %s506, 64
        $region40: #{tpu_custom_call.1} parent=35 // pred_fallthru
          _
      $region36: #{tpu_custom_call.1} parent=5 // pred_fallthru
        _
    $region6: #{tpu_custom_call.1} parent=1 // loop_footer
      %s17 = sadd.s32 1, %s13
    $region7: #{tpu_custom_call.1} parent=1 // loop_footer_branch
      %12 = sbr.rel target = $region3
    $region8: #{tpu_custom_call.1} parent=1 // loop_exit
      _
    %512 = vsyncpa [#allocation3], 1
    %s513 = scalar_lea.sflag [#allocation3], 1
    %514 = vsyncpa %s513, 1
    %515 = vsyncpa [#allocation4], 1
    %s516 = scalar_lea.sflag [#allocation4], 1
    %517 = vsyncpa %s516, 1

</llo_original>
